<compile_context>
chip_gen: v6e
topology: v6e:2x2x1
jax: 0.10.0
libtpu: 0.0.40
codegen_flags: <defaults>
</compile_context>

<pallas_src>
import jax
import jax.numpy as jnp
from jax import lax
from jax.experimental import pallas as pl
from jax.experimental.pallas import tpu as pltpu

EPS = 1e-5
_MAX_BLOCK_BYTES = 2 * 1024 * 1024      # per-block budget; double-buffered in+out ~= 8 MiB
_MAX_CHANNEL_TILE = 64
_VMEM_LIMIT_BYTES = 32 * 1024 * 1024


def _pick_channel_tile(C, HW, itemsize):
    """Largest channel tile that divides C, is a multiple of 8 (or all of C),
    and keeps one (1, tile, HW) block under the byte budget."""
    cands = [d for d in range(1, C + 1)
             if C % d == 0 and (d % 8 == 0 or d == C)]
    fitting = [d for d in cands
               if d <= _MAX_CHANNEL_TILE and d * HW * itemsize <= _MAX_BLOCK_BYTES]
    return max(fitting) if fitting else min(cands)


def _bn_stats_kernel(x_ref, sum_ref, ssq_ref):
    """Accumulate per-channel sum / sum-of-squares over (N, H*W).

    Grid = (bn_channel_tiles, N); N (last axis) is the accumulation axis, and the
    output block index is constant along it, so sum/ssq stay resident in VMEM.
    """
    @pl.when(pl.program_id(1) == 0)
    def _init():
        sum_ref[...] = jnp.zeros_like(sum_ref)
        ssq_ref[...] = jnp.zeros_like(ssq_ref)

    x = x_ref[...].astype(jnp.float32)                     # (1, CT, HW)
    sum_ref[...] += jnp.sum(x, axis=-1, keepdims=True)     # (1, CT, 1)
    ssq_ref[...] += jnp.sum(x * x, axis=-1, keepdims=True)


def _ibn_norm_kernel(x_ref, g_ref, b_ref, m_ref, o_ref):
    """Normalize one (1, CT, HW) block.

    IN channels (mask=1): stats computed here per (sample, channel) over H*W.
    BN channels (mask=0): g/b already hold the folded batch-stat scale/shift.
    """
    x = x_ref[...].astype(jnp.float32)                     # (1, CT, HW)
    inv_hw = 1.0 / x.shape[-1]

    # One-pass per-(sample, channel) statistics over the spatial (lane) axis.
    s = jnp.sum(x, axis=-1, keepdims=True)                 # (1, CT, 1)
    ss = jnp.sum(x * x, axis=-1, keepdims=True)
    mean = s * inv_hw
    var = jnp.maximum(ss * inv_hw - mean * mean, 0.0)
    inv_std = lax.rsqrt(var + EPS)

    g = g_ref[...][None]                                   # (1, CT, 1)
    b = b_ref[...][None]
    m = m_ref[...][None]                                   # 1.0 -> IN channel, 0.0 -> BN channel

    scale = g * (m * inv_std + (1.0 - m))                  # IN: gamma*rsqrt(var+eps) ; BN: folded scale
    shift = b - m * mean * scale                           # IN: beta - mean*scale   ; BN: folded shift
    o_ref[...] = (x * scale + shift).astype(o_ref.dtype)


def ibn_forward(x_nchw, params):
    """IBN forward. x_nchw: (N, C, H, W); params: IN/BN affine weights."""
    N, C, H, W = x_nchw.shape
    half1 = C * 3 // 4            # integer split (matches PyTorch planes*3//4)
    half2 = C - half1
    HW = H * W

    x3 = x_nchw.reshape(N, C, HW)                 # free row-major reshape
    dtype = x3.dtype
    ct = _pick_channel_tile(C, HW, jnp.dtype(dtype).itemsize)
    n_c_tiles = C // ct

    # ---- phase 1: BN-channel sum / sum-sq (Pallas grid reduction over N) ----
    first_bn_tile = half1 // ct                   # first channel tile touching BN channels
    n_stat_tiles = n_c_tiles - first_bn_tile
    sums, ssqs = pl.pallas_call(
        _bn_stats_kernel,
        grid=(n_stat_tiles, N),
        in_specs=[pl.BlockSpec((1, ct, HW),
                               lambda c, n: (n, first_bn_tile + c, 0))],
        out_specs=(pl.BlockSpec((1, ct, 1), lambda c, n: (c, 0, 0)),
                   pl.BlockSpec((1, ct, 1), lambda c, n: (c, 0, 0))),
        out_shape=(jax.ShapeDtypeStruct((n_stat_tiles, ct, 1), jnp.float32),
                   jax.ShapeDtypeStruct((n_stat_tiles, ct, 1), jnp.float32)),
        compiler_params=pltpu.CompilerParams(
            dimension_semantics=("parallel", "arbitrary"),
            vmem_limit_bytes=_VMEM_LIMIT_BYTES),
    )(x3)

    # Fold BN batch statistics into per-channel scale/shift (tiny XLA glue).
    off = half1 - first_bn_tile * ct
    bn_sum = sums.reshape(-1)[off:off + half2]
    bn_ssq = ssqs.reshape(-1)[off:off + half2]
    cnt = float(N * HW)
    bn_mean = bn_sum / cnt
    bn_var = jnp.maximum(bn_ssq / cnt - bn_mean * bn_mean, 0.0)
    bn_scale = params["bn_weight"].astype(jnp.float32) * lax.rsqrt(bn_var + EPS)
    bn_shift = params["bn_bias"].astype(jnp.float32) - bn_mean * bn_scale

    # Per-channel vectors shared by both halves: IN channels carry (gamma, beta)
    # with mask=1; BN channels carry the folded (scale, shift) with mask=0.
    g = jnp.concatenate([params["in_weight"].astype(jnp.float32), bn_scale]).reshape(C, 1)
    b = jnp.concatenate([params["in_bias"].astype(jnp.float32), bn_shift]).reshape(C, 1)
    m = jnp.concatenate([jnp.ones((half1,), jnp.float32),
                         jnp.zeros((half2,), jnp.float32)]).reshape(C, 1)

    # ---- phase 2: tiled, pipelined normalization of the whole tensor ----
    out3 = pl.pallas_call(
        _ibn_norm_kernel,
        grid=(N, n_c_tiles),
        in_specs=[pl.BlockSpec((1, ct, HW), lambda n, c: (n, c, 0)),
                  pl.BlockSpec((ct, 1), lambda n, c: (c, 0)),
                  pl.BlockSpec((ct, 1), lambda n, c: (c, 0)),
                  pl.BlockSpec((ct, 1), lambda n, c: (c, 0))],
        out_specs=pl.BlockSpec((1, ct, HW), lambda n, c: (n, c, 0)),
        out_shape=jax.ShapeDtypeStruct((N, C, HW), dtype),
        compiler_params=pltpu.CompilerParams(
            dimension_semantics=("parallel", "parallel"),
            vmem_limit_bytes=_VMEM_LIMIT_BYTES),
    )(x3, g, b, m)

    return out3.reshape(N, C, H, W)


def _reference(x, params):
    """Pure-JAX reference mirroring PyTorch IBN forward (training mode)."""
    N, C, H, W = x.shape
    half1 = C * 3 // 4
    x1, x2 = x[:, :half1], x[:, half1:]
    # InstanceNorm2d (affine)
    m1 = jnp.mean(x1, axis=(2, 3), keepdims=True)
    v1 = jnp.mean((x1 - m1) ** 2, axis=(2, 3), keepdims=True)
    o1 = (x1 - m1) / jnp.sqrt(v1 + EPS)
    o1 = o1 * params["in_weight"][None, :, None, None] + params["in_bias"][None, :, None, None]
    # BatchNorm2d (training: batch statistics, biased variance)
    m2 = jnp.mean(x2, axis=(0, 2, 3), keepdims=True)
    v2 = jnp.mean((x2 - m2) ** 2, axis=(0, 2, 3), keepdims=True)
    o2 = (x2 - m2) / jnp.sqrt(v2 + EPS)
    o2 = o2 * params["bn_weight"][None, :, None, None] + params["bn_bias"][None, :, None, None]
    return jnp.concatenate([o1, o2], axis=1)


if __name__ == "__main__":
    key = jax.random.PRNGKey(0)
    N, planes, H, W = 2, 4, 16, 16
    half1 = planes * 3 // 4
    half2 = planes - half1

    k_x, k_gin, k_bin, k_gbn, k_bbn = jax.random.split(key, 5)
    x = jax.random.normal(k_x, (N, planes, H, W), dtype=jnp.float32)

    # Non-trivial affine parameters so the affine path is exercised.
    params = {
        "in_weight": 1.0 + 0.1 * jax.random.normal(k_gin, (half1,), jnp.float32),
        "in_bias": 0.1 * jax.random.normal(k_bin, (half1,), jnp.float32),
        "bn_weight": 1.0 + 0.1 * jax.random.normal(k_gbn, (half2,), jnp.float32),
        "bn_bias": 0.1 * jax.random.normal(k_bbn, (half2,), jnp.float32),
    }

    out = jax.block_until_ready(jax.jit(ibn_forward)(x, params))
    ref = jax.block_until_ready(_reference(x, params))

    assert out.shape == (N, planes, H, W)
    max_err = float(jnp.max(jnp.abs(out - ref)))
    assert max_err < 5e-4, f"mismatch vs reference: {max_err}"
    print("KERNEL_OK")
</pallas_src>

<mosaic_0001>
module attributes {stable_mosaic.version = 11 : i64} {
  func.func @_bn_stats_kernel(%arg0: i32, %arg1: i32, %arg2: memref<1x4x256xf32, #tpu.memory_space<vmem>>, %arg3: memref<1x4x1xf32, #tpu.memory_space<vmem>>, %arg4: memref<1x4x1xf32, #tpu.memory_space<vmem>>) attributes {dimension_semantics = [#tpu.dimension_semantics<parallel>, #tpu.dimension_semantics<arbitrary>], iteration_bounds = array<i64: 1, 2>, scalar_prefetch = 0 : i64, scratch_operands = 0 : i64, tpu.core_type = #tpu.core_type<tc>, window_params = [{transform_indices = @transform_0, window_bounds = array<i64: 1, 4, 256>}, {transform_indices = @transform_1, window_bounds = array<i64: 1, 4, 1>}, {transform_indices = @transform_2, window_bounds = array<i64: 1, 4, 1>}]} {
    %c0_i32 = arith.constant 0 : i32
    %0 = arith.cmpi eq, %arg1, %c0_i32 : i32
    %1 = arith.extui %0 : i1 to i32
    %c0_i32_0 = arith.constant 0 : i32
    %2 = arith.cmpi ne, %1, %c0_i32_0 : i32
    scf.if %2 {
      %cst_16 = arith.constant 0.000000e+00 : f32
      %15 = vector.broadcast %cst_16 : f32 to vector<1x4x1xf32>
      %c0_17 = arith.constant 0 : index
      %c0_18 = arith.constant 0 : index
      %c0_19 = arith.constant 0 : index
      %16 = vector.load %arg3[%c0_17, %c0_18, %c0_19] : memref<1x4x1xf32, #tpu.memory_space<vmem>>, vector<1x4x1xf32>
      tpu.vector_store %arg3[%c0_17, %c0_18, %c0_19], %15 {strides = array<i32>} : memref<1x4x1xf32, #tpu.memory_space<vmem>>, vector<1x4x1xf32>,
      %cst_20 = arith.constant 0.000000e+00 : f32
      %17 = vector.broadcast %cst_20 : f32 to vector<1x4x1xf32>
      %c0_21 = arith.constant 0 : index
      %c0_22 = arith.constant 0 : index
      %c0_23 = arith.constant 0 : index
      %18 = vector.load %arg4[%c0_21, %c0_22, %c0_23] : memref<1x4x1xf32, #tpu.memory_space<vmem>>, vector<1x4x1xf32>
      tpu.vector_store %arg4[%c0_21, %c0_22, %c0_23], %17 {strides = array<i32>} : memref<1x4x1xf32, #tpu.memory_space<vmem>>, vector<1x4x1xf32>,
    } else {
    }
    %c0 = arith.constant 0 : index
    %c0_1 = arith.constant 0 : index
    %c0_2 = arith.constant 0 : index
    %3 = vector.load %arg2[%c0, %c0_1, %c0_2] : memref<1x4x256xf32, #tpu.memory_space<vmem>>, vector<1x4x256xf32>
    %c0_3 = arith.constant 0 : index
    %c0_4 = arith.constant 0 : index
    %c0_5 = arith.constant 0 : index
    %4 = vector.load %arg3[%c0_3, %c0_4, %c0_5] : memref<1x4x1xf32, #tpu.memory_space<vmem>>, vector<1x4x1xf32>
    %cst = arith.constant dense<0.000000e+00> : vector<1x4xf32>
    %5 = vector.multi_reduction <add>, %3, %cst [2] : vector<1x4x256xf32> to vector<1x4xf32>
    %6 = vector.shape_cast %5 : vector<1x4xf32> to vector<1x4x1xf32>
    %7 = arith.addf %4, %6 : vector<1x4x1xf32>
    %c0_6 = arith.constant 0 : index
    %c0_7 = arith.constant 0 : index
    %c0_8 = arith.constant 0 : index
    %8 = vector.load %arg3[%c0_6, %c0_7, %c0_8] : memref<1x4x1xf32, #tpu.memory_space<vmem>>, vector<1x4x1xf32>
    tpu.vector_store %arg3[%c0_6, %c0_7, %c0_8], %7 {strides = array<i32>} : memref<1x4x1xf32, #tpu.memory_space<vmem>>, vector<1x4x1xf32>,
    %c0_9 = arith.constant 0 : index
    %c0_10 = arith.constant 0 : index
    %c0_11 = arith.constant 0 : index
    %9 = vector.load %arg4[%c0_9, %c0_10, %c0_11] : memref<1x4x1xf32, #tpu.memory_space<vmem>>, vector<1x4x1xf32>
    %10 = arith.mulf %3, %3 : vector<1x4x256xf32>
    %cst_12 = arith.constant dense<0.000000e+00> : vector<1x4xf32>
    %11 = vector.multi_reduction <add>, %10, %cst_12 [2] : vector<1x4x256xf32> to vector<1x4xf32>
    %12 = vector.shape_cast %11 : vector<1x4xf32> to vector<1x4x1xf32>
    %13 = arith.addf %9, %12 : vector<1x4x1xf32>
    %c0_13 = arith.constant 0 : index
    %c0_14 = arith.constant 0 : index
    %c0_15 = arith.constant 0 : index
    %14 = vector.load %arg4[%c0_13, %c0_14, %c0_15] : memref<1x4x1xf32, #tpu.memory_space<vmem>>, vector<1x4x1xf32>
    tpu.vector_store %arg4[%c0_13, %c0_14, %c0_15], %13 {strides = array<i32>} : memref<1x4x1xf32, #tpu.memory_space<vmem>>, vector<1x4x1xf32>,
    return
  }
  func.func @transform_0(%arg0: i32, %arg1: i32) -> (i32, i32, i32) {
    %c0_i32 = arith.constant 0 : i32
    %0 = arith.addi %c0_i32, %arg0 : i32
    %c0_i32_0 = arith.constant 0 : i32
    %c0_i32_1 = arith.constant 0 : i32
    return %arg1, %0, %c0_i32_0 : i32, i32, i32
  }
  func.func @transform_1(%arg0: i32, %arg1: i32) -> (i32, i32, i32) {
    %c0_i32 = arith.constant 0 : i32
    %c0_i32_0 = arith.constant 0 : i32
    %c0_i32_1 = arith.constant 0 : i32
    return %arg0, %c0_i32, %c0_i32_0 : i32, i32, i32
  }
  func.func @transform_2(%arg0: i32, %arg1: i32) -> (i32, i32, i32) {
    %c0_i32 = arith.constant 0 : i32
    %c0_i32_0 = arith.constant 0 : i32
    %c0_i32_1 = arith.constant 0 : i32
    return %arg0, %c0_i32, %c0_i32_0 : i32, i32, i32
  }
}

module attributes {stable_mosaic.version = 11 : i64} {
  func.func @_ibn_norm_kernel(%arg0: i32, %arg1: i32, %arg2: memref<1x4x256xf32, #tpu.memory_space<vmem>>, %arg3: memref<4x1xf32, #tpu.memory_space<vmem>>, %arg4: memref<4x1xf32, #tpu.memory_space<vmem>>, %arg5: memref<4x1xf32, #tpu.memory_space<vmem>>, %arg6: memref<1x4x256xf32, #tpu.memory_space<vmem>>) attributes {dimension_semantics = [#tpu.dimension_semantics<parallel>, #tpu.dimension_semantics<parallel>], iteration_bounds = array<i64: 2, 1>, scalar_prefetch = 0 : i64, scratch_operands = 0 : i64, tpu.core_type = #tpu.core_type<tc>, window_params = [{transform_indices = @transform_0, window_bounds = array<i64: 1, 4, 256>}, {transform_indices = @transform_1, window_bounds = array<i64: 4, 1>}, {transform_indices = @transform_2, window_bounds = array<i64: 4, 1>}, {transform_indices = @transform_3, window_bounds = array<i64: 4, 1>}, {transform_indices = @transform_4, window_bounds = array<i64: 1, 4, 256>}]} {
    %c0 = arith.constant 0 : index
    %c0_0 = arith.constant 0 : index
    %c0_1 = arith.constant 0 : index
    %0 = vector.load %arg2[%c0, %c0_0, %c0_1] : memref<1x4x256xf32, #tpu.memory_space<vmem>>, vector<1x4x256xf32>
    %cst = arith.constant dense<0.000000e+00> : vector<1x4xf32>
    %1 = vector.multi_reduction <add>, %0, %cst [2] : vector<1x4x256xf32> to vector<1x4xf32>
    %2 = vector.shape_cast %1 : vector<1x4xf32> to vector<1x4x1xf32>
    %3 = arith.mulf %0, %0 : vector<1x4x256xf32>
    %cst_2 = arith.constant dense<0.000000e+00> : vector<1x4xf32>
    %4 = vector.multi_reduction <add>, %3, %cst_2 [2] : vector<1x4x256xf32> to vector<1x4xf32>
    %5 = vector.shape_cast %4 : vector<1x4xf32> to vector<1x4x1xf32>
    %cst_3 = arith.constant 3.906250e-03 : f32
    %6 = vector.broadcast %cst_3 : f32 to vector<1x4x1xf32>
    %7 = arith.mulf %2, %6 : vector<1x4x1xf32>
    %cst_4 = arith.constant 3.906250e-03 : f32
    %8 = vector.broadcast %cst_4 : f32 to vector<1x4x1xf32>
    %9 = arith.mulf %5, %8 : vector<1x4x1xf32>
    %10 = arith.mulf %7, %7 : vector<1x4x1xf32>
    %11 = arith.subf %9, %10 : vector<1x4x1xf32>
    %cst_5 = arith.constant 0.000000e+00 : f32
    %12 = vector.broadcast %cst_5 : f32 to vector<1x4x1xf32>
    %13 = arith.maximumf %11, %12 : vector<1x4x1xf32>
    %cst_6 = arith.constant 9.99999974E-6 : f32
    %14 = vector.broadcast %cst_6 : f32 to vector<1x4x1xf32>
    %15 = arith.addf %13, %14 : vector<1x4x1xf32>
    %16 = math.rsqrt %15 : vector<1x4x1xf32>
    %c0_7 = arith.constant 0 : index
    %c0_8 = arith.constant 0 : index
    %17 = vector.load %arg3[%c0_7, %c0_8] : memref<4x1xf32, #tpu.memory_space<vmem>>, vector<4x1xf32>
    %18 = vector.shape_cast %17 : vector<4x1xf32> to vector<1x4x1xf32>
    %c0_9 = arith.constant 0 : index
    %c0_10 = arith.constant 0 : index
    %19 = vector.load %arg4[%c0_9, %c0_10] : memref<4x1xf32, #tpu.memory_space<vmem>>, vector<4x1xf32>
    %20 = vector.shape_cast %19 : vector<4x1xf32> to vector<1x4x1xf32>
    %c0_11 = arith.constant 0 : index
    %c0_12 = arith.constant 0 : index
    %21 = vector.load %arg5[%c0_11, %c0_12] : memref<4x1xf32, #tpu.memory_space<vmem>>, vector<4x1xf32>
    %22 = vector.shape_cast %21 : vector<4x1xf32> to vector<1x4x1xf32>
    %23 = arith.mulf %22, %16 : vector<1x4x1xf32>
    %cst_13 = arith.constant 1.000000e+00 : f32
    %24 = vector.broadcast %cst_13 : f32 to vector<1x4x1xf32>
    %25 = arith.subf %24, %22 : vector<1x4x1xf32>
    %26 = arith.addf %23, %25 : vector<1x4x1xf32>
    %27 = arith.mulf %18, %26 : vector<1x4x1xf32>
    %28 = arith.mulf %22, %7 : vector<1x4x1xf32>
    %29 = arith.mulf %28, %27 : vector<1x4x1xf32>
    %30 = arith.subf %20, %29 : vector<1x4x1xf32>
    %31 = vector.broadcast %27 : vector<1x4x1xf32> to vector<1x4x256xf32>
    %32 = arith.mulf %0, %31 : vector<1x4x256xf32>
    %33 = vector.broadcast %30 : vector<1x4x1xf32> to vector<1x4x256xf32>
    %34 = arith.addf %32, %33 : vector<1x4x256xf32>
    %c0_14 = arith.constant 0 : index
    %c0_15 = arith.constant 0 : index
    %c0_16 = arith.constant 0 : index
    %35 = vector.load %arg6[%c0_14, %c0_15, %c0_16] : memref<1x4x256xf32, #tpu.memory_space<vmem>>, vector<1x4x256xf32>
    tpu.vector_store %arg6[%c0_14, %c0_15, %c0_16], %34 {strides = array<i32>} : memref<1x4x256xf32, #tpu.memory_space<vmem>>, vector<1x4x256xf32>,
    return
  }
  func.func @transform_0(%arg0: i32, %arg1: i32) -> (i32, i32, i32) {
    %c0_i32 = arith.constant 0 : i32
    %c0_i32_0 = arith.constant 0 : i32
    return %arg0, %arg1, %c0_i32 : i32, i32, i32
  }
  func.func @transform_1(%arg0: i32, %arg1: i32) -> (i32, i32) {
    %c0_i32 = arith.constant 0 : i32
    %c0_i32_0 = arith.constant 0 : i32
    return %arg1, %c0_i32 : i32, i32
  }
  func.func @transform_2(%arg0: i32, %arg1: i32) -> (i32, i32) {
    %c0_i32 = arith.constant 0 : i32
    %c0_i32_0 = arith.constant 0 : i32
    return %arg1, %c0_i32 : i32, i32
  }
  func.func @transform_3(%arg0: i32, %arg1: i32) -> (i32, i32) {
    %c0_i32 = arith.constant 0 : i32
    %c0_i32_0 = arith.constant 0 : i32
    return %arg1, %c0_i32 : i32, i32
  }
  func.func @transform_4(%arg0: i32, %arg1: i32) -> (i32, i32, i32) {
    %c0_i32 = arith.constant 0 : i32
    %c0_i32_0 = arith.constant 0 : i32
    return %arg0, %arg1, %c0_i32 : i32, i32, i32
  }
}

</mosaic_0001>

<llo_original>
// kernel: ibn_forward.3
$region0: #{ibn_forward.3}
  #allocation0 [shape = 'u32[]', space=smem, size = 0x4, offset = 0x4, fixed_abs, tag = 'smem constant byte address 0x4 - core index']
  #allocation1 [shape = 'u32[144,128]{1,0:T(1,128)}', space=vmem, size = 0x12000, scoped, tag = 'internal scratch']
  %s0 = inlined_call_operand.vmem [shape: f32[2,4,256], index: 0, kind: input, shape index: {}]
  %s1 = inlined_call_operand.vmem [shape: f32[4,1], index: 1, kind: input, shape index: {}]
  %s2 = inlined_call_operand.vmem [shape: f32[4,1], index: 2, kind: input, shape index: {}]
  %s3 = inlined_call_operand.vmem [shape: f32[4,1], index: 3, kind: input, shape index: {}]
  %s4 = inlined_call_operand.vmem [shape: f32[2,4,256], index: 4, kind: output, shape index: {}]
  %s5 = sld [smem:[#allocation0]]
  $region49: #{ibn_forward.3} parent=0
    _
  %s7 = ssub.s32 1, %s5
  %s8 = scalar_select 0, %s7, %s5
  loop: start=0, step=1, limit=4
  $region2: #{ibn_forward.3} parent=0 // loop_pre_header
    _
  $region3: #{ibn_forward.3} parent=0 // loop_header
    %s10 = sphi 0, %s14
    %p11 = scmp.ge.s32.totalorder %s10, 4
    %s17 = sphi 0, %s29
    %s18 = sphi 0, %s25
    %s19 = sphi 0, %s17
    %s20 = sphi 0, %s18
    %s21 = sphi 0, %s19
    %s22 = sphi 0, %s20
    %s34 = sphi 0, %s36
    %s37 = sphi 0, %s34
    %s38 = sphi 0, %s37
    %s54 = sphi 0, %s38
    %s60 = sphi 0, %s62
    %s63 = sphi 0, %s60
    %s64 = sphi 0, %s63
    %s80 = sphi 0, %s64
    %s86 = sphi 0, %s88
    %s89 = sphi 0, %s86
    %s90 = sphi 0, %s89
    %s106 = sphi 0, %s90
    %s112 = sphi 0, %s114
    %s115 = sphi 0, %s112
    %s116 = sphi 0, %s115
    %s132 = sphi 0, %s116
    %s140 = sphi 0, %s142
    %s143 = sphi 0, %s140
    %s144 = sphi 0, %s143
    %s160 = sphi 0, %s144
  $region4: #{ibn_forward.3} parent=0 // loop_header_branch
    %13 = sbr.rel (%p11) target = $region8
  $region5: #{ibn_forward.3} parent=0 // loop_body
    %s15 = ssub.s32 %s10, 1
    %s16 = ssub.s32 %s10, 2
    %s23 = sadd.s32 1, %s18
    %p24 = scmp.ge.s32.totalorder %s23, 1
    %s25 = scalar_select %p24, 0, %s23
    %s26 = sadd.s32 1, %s17
    %s27 = scalar_select %p24, %s26, %s17
    %p28 = scmp.ge.s32.totalorder %s27, 2
    %s29 = scalar_select %p28, 0, %s27
    %s30 = ssub.s32 %s17, %s29
    %s31 = ssub.s32 %s18, %s25
    %s32 = sor.u32 %s30, %s31
    %p33 = scmp.eq.s32.totalorder %s32, 0
    %s35 = sadd.s32 %s34, 1
    %s36 = scalar_select %p33, %s34, %s35
    %p39 = pneg %p33
    %p40 = scmp.eq.s32.totalorder %s10, 1
    %p41 = por %p39, %p40
    %p42 = scmp.ne.s32.totalorder %s34, %s37
    %p43 = scmp.eq.s32.totalorder %s10, 0
    %p44 = por %p42, %p43
    %p45 = scmp.ne.s32.totalorder %s34, %s37
    %p46 = scmp.eq.s32.totalorder %s15, 1
    %p47 = por %p45, %p46
    %p48 = scmp.ne.s32.totalorder %s37, %s38
    %p49 = scmp.eq.s32.totalorder %s15, 0
    %p50 = por %p48, %p49
    %p51 = scmp.ne.s32.totalorder %s37, %s38
    %p52 = scmp.eq.s32.totalorder %s16, 1
    %p53 = por %p51, %p52
    %p55 = scmp.ne.s32.totalorder %s38, %s54
    %p56 = scmp.eq.s32.totalorder %s16, 0
    %p57 = por %p55, %p56
    %s58 = ssub.s32 %s18, %s25
    %p59 = scmp.eq.s32.totalorder %s58, 0
    %s61 = sadd.s32 %s60, 1
    %s62 = scalar_select %p59, %s60, %s61
    %p65 = pneg %p59
    %p66 = scmp.eq.s32.totalorder %s10, 1
    %p67 = por %p65, %p66
    %p68 = scmp.ne.s32.totalorder %s60, %s63
    %p69 = scmp.eq.s32.totalorder %s10, 0
    %p70 = por %p68, %p69
    %p71 = scmp.ne.s32.totalorder %s60, %s63
    %p72 = scmp.eq.s32.totalorder %s15, 1
    %p73 = por %p71, %p72
    %p74 = scmp.ne.s32.totalorder %s63, %s64
    %p75 = scmp.eq.s32.totalorder %s15, 0
    %p76 = por %p74, %p75
    %p77 = scmp.ne.s32.totalorder %s63, %s64
    %p78 = scmp.eq.s32.totalorder %s16, 1
    %p79 = por %p77, %p78
    %p81 = scmp.ne.s32.totalorder %s64, %s80
    %p82 = scmp.eq.s32.totalorder %s16, 0
    %p83 = por %p81, %p82
    %s84 = ssub.s32 %s18, %s25
    %p85 = scmp.eq.s32.totalorder %s84, 0
    %s87 = sadd.s32 %s86, 1
    %s88 = scalar_select %p85, %s86, %s87
    %p91 = pneg %p85
    %p92 = scmp.eq.s32.totalorder %s10, 1
    %p93 = por %p91, %p92
    %p94 = scmp.ne.s32.totalorder %s86, %s89
    %p95 = scmp.eq.s32.totalorder %s10, 0
    %p96 = por %p94, %p95
    %p97 = scmp.ne.s32.totalorder %s86, %s89
    %p98 = scmp.eq.s32.totalorder %s15, 1
    %p99 = por %p97, %p98
    %p100 = scmp.ne.s32.totalorder %s89, %s90
    %p101 = scmp.eq.s32.totalorder %s15, 0
    %p102 = por %p100, %p101
    %p103 = scmp.ne.s32.totalorder %s89, %s90
    %p104 = scmp.eq.s32.totalorder %s16, 1
    %p105 = por %p103, %p104
    %p107 = scmp.ne.s32.totalorder %s90, %s106
    %p108 = scmp.eq.s32.totalorder %s16, 0
    %p109 = por %p107, %p108
    %s110 = ssub.s32 %s18, %s25
    %p111 = scmp.eq.s32.totalorder %s110, 0
    %s113 = sadd.s32 %s112, 1
    %s114 = scalar_select %p111, %s112, %s113
    %p117 = pneg %p111
    %p118 = scmp.eq.s32.totalorder %s10, 1
    %p119 = por %p117, %p118
    %p120 = scmp.ne.s32.totalorder %s112, %s115
    %p121 = scmp.eq.s32.totalorder %s10, 0
    %p122 = por %p120, %p121
    %p123 = scmp.ne.s32.totalorder %s112, %s115
    %p124 = scmp.eq.s32.totalorder %s15, 1
    %p125 = por %p123, %p124
    %p126 = scmp.ne.s32.totalorder %s115, %s116
    %p127 = scmp.eq.s32.totalorder %s15, 0
    %p128 = por %p126, %p127
    %p129 = scmp.ne.s32.totalorder %s115, %s116
    %p130 = scmp.eq.s32.totalorder %s16, 1
    %p131 = por %p129, %p130
    %p133 = scmp.ne.s32.totalorder %s116, %s132
    %p134 = scmp.eq.s32.totalorder %s16, 0
    %p135 = por %p133, %p134
    %s136 = ssub.s32 %s17, %s29
    %s137 = ssub.s32 %s18, %s25
    %s138 = sor.u32 %s136, %s137
    %p139 = scmp.eq.s32.totalorder %s138, 0
    %s141 = sadd.s32 %s140, 1
    %s142 = scalar_select %p139, %s140, %s141
    %p145 = pneg %p139
    %p146 = scmp.eq.s32.totalorder %s10, 1
    %p147 = por %p145, %p146
    %p148 = scmp.ne.s32.totalorder %s140, %s143
    %p149 = scmp.eq.s32.totalorder %s10, 0
    %p150 = por %p148, %p149
    %p151 = scmp.ne.s32.totalorder %s140, %s143
    %p152 = scmp.eq.s32.totalorder %s15, 1
    %p153 = por %p151, %p152
    %p154 = scmp.ne.s32.totalorder %s143, %s144
    %p155 = scmp.eq.s32.totalorder %s15, 0
    %p156 = por %p154, %p155
    %p157 = scmp.ne.s32.totalorder %s143, %s144
    %p158 = scmp.eq.s32.totalorder %s16, 1
    %p159 = por %p157, %p158
    %p161 = scmp.ne.s32.totalorder %s144, %s160
    %p162 = scmp.eq.s32.totalorder %s16, 0
    %p163 = por %p161, %p162
    %p164 = scmp.le.s32.totalorder 1, %s10
    %p165 = scmp.lt.s32.totalorder %s10, 3
    %p166 = pnand %p164, %p165
    %p167 = pneg %p166
    // Predicated region
    $region9: #{ibn_forward.3} parent=5 // pred_check
      _
    $region10: #{ibn_forward.3} parent=5 // pred_check_branch
      %169 = sbr.rel (%p166) target = $region12
    $region11: #{ibn_forward.3} parent=5 // pred_region
      %s170 = ssub.s32 %s10, 1
      // Predicated region
      $region13: #{ibn_forward.3} parent=11 // pred_check
        %p171 = pneg %p76
      $region14: #{ibn_forward.3} parent=11 // pred_check_branch
        %173 = sbr.rel (%p171) target = $region16
      $region15: #{ibn_forward.3} parent=11 // pred_region
        %p174 = scmp.lt.s32.totalorder %s20, 0
        %s175 = scalar_select %p174, %s20, 0
        %s176 = smul.addr %s175, 4
        %s177 = scalar_lea.vmem %s1, %s176
      $region16: #{ibn_forward.3} parent=11 // pred_fallthru
        _
      // Predicated region
      $region17: #{ibn_forward.3} parent=11 // pred_check
        %p178 = pneg %p102
      $region18: #{ibn_forward.3} parent=11 // pred_check_branch
        %180 = sbr.rel (%p178) target = $region20
      $region19: #{ibn_forward.3} parent=11 // pred_region
        %p181 = scmp.lt.s32.totalorder %s20, 0
        %s182 = scalar_select %p181, %s20, 0
        %s183 = smul.addr %s182, 4
        %s184 = scalar_lea.vmem %s2, %s183
      $region20: #{ibn_forward.3} parent=11 // pred_fallthru
        _
      // Predicated region
      $region21: #{ibn_forward.3} parent=11 // pred_check
        %p185 = pneg %p128
      $region22: #{ibn_forward.3} parent=11 // pred_check_branch
        %187 = sbr.rel (%p185) target = $region24
      $region23: #{ibn_forward.3} parent=11 // pred_region
        %p188 = scmp.lt.s32.totalorder %s20, 0
        %s189 = scalar_select %p188, %s20, 0
        %s190 = smul.addr %s189, 4
        %s191 = scalar_lea.vmem %s3, %s190
      $region24: #{ibn_forward.3} parent=11 // pred_fallthru
        _
    $region12: #{ibn_forward.3} parent=5 // pred_fallthru
      _
    %p192 = scmp.lt.s32.totalorder %s10, 2
    // Predicated region
    $region25: #{ibn_forward.3} parent=5 // pred_check
      %p193 = pneg %p192
    $region26: #{ibn_forward.3} parent=5 // pred_check_branch
      %195 = sbr.rel (%p193) target = $region28
    $region27: #{ibn_forward.3} parent=5 // pred_region
      // Predicated region
      $region29: #{ibn_forward.3} parent=27 // pred_check
        %p196 = pneg %p44
      $region30: #{ibn_forward.3} parent=27 // pred_check_branch
        %198 = sbr.rel (%p196) target = $region32
      $region31: #{ibn_forward.3} parent=27 // pred_region
        %p199 = scmp.lt.s32.totalorder %s17, 1
        %s200 = scalar_select %p199, %s17, 1
        %p201 = scmp.lt.s32.totalorder %s18, 0
        %s202 = scalar_select %p201, %s18, 0
        %s203 = smul.addr %s202, 2
        %s204 = smul.addr %s200, 2
        %s205 = sadd.s32 %s203, %s204
        %s206 = smul.addr %s205, 4
        %s207 = scalar_lea.vmem %s0, %s206
      $region32: #{ibn_forward.3} parent=27 // pred_fallthru
        _
    $region28: #{ibn_forward.3} parent=5 // pred_fallthru
      _
    %p208 = scmp.le.s32.totalorder 1, %s10
    %p209 = scmp.lt.s32.totalorder %s10, 3
    %p210 = pnand %p208, %p209
    %p211 = pneg %p210
    // Predicated region
    $region33: #{ibn_forward.3} parent=5 // pred_check
      _
    $region34: #{ibn_forward.3} parent=5 // pred_check_branch
      %213 = sbr.rel (%p210) target = $region36
    $region35: #{ibn_forward.3} parent=5 // pred_region
      %s214 = ssub.s32 %s10, 1
      %p215 = scmp.lt.s32.totalorder %s19, 1
      %s216 = scalar_select %p215, %s19, 1
      %p217 = scmp.lt.s32.totalorder %s20, 0
      %s218 = scalar_select %p217, %s20, 0
      %s219 = smul.addr %s218, 2
      %s220 = smul.addr %s216, 2
      %s221 = sadd.s32 %s219, %s220
      %s222 = smul.addr %s221, 4
      %s223 = scalar_lea.vmem %s0, %s222
      %p224 = pneg %p50
      %p225 = pneg %p47
      %p226 = scmp.lt.s32.totalorder %s20, 0
      %s227 = scalar_select %p226, %s20, 0
      %s228 = smul.addr %s227, 4
      %s229 = scalar_lea.vmem %s1, %s228
      %p230 = pneg %p76
      %p231 = pneg %p73
      %p232 = scmp.lt.s32.totalorder %s20, 0
      %s233 = scalar_select %p232, %s20, 0
      %s234 = smul.addr %s233, 4
      %s235 = scalar_lea.vmem %s2, %s234
      %p236 = pneg %p102
      %p237 = pneg %p99
      %p238 = scmp.lt.s32.totalorder %s20, 0
      %s239 = scalar_select %p238, %s20, 0
      %s240 = smul.addr %s239, 4
      %s241 = scalar_lea.vmem %s3, %s240
      %p242 = pneg %p128
      %p243 = pneg %p125
      %p244 = pneg %p156
      %p245 = pneg %p153
      %p246 = scmp.lt.s32.totalorder %s19, 1
      %s247 = scalar_select %p246, %s19, 1
      %p248 = scmp.lt.s32.totalorder %s20, 0
      %s249 = scalar_select %p248, %s20, 0
      %s250 = smul.addr %s249, 2
      %s251 = smul.addr %s247, 2
      %s252 = sadd.s32 %s250, %s251
      %s253 = smul.addr %s252, 4
      %s254 = scalar_lea.vmem %s4, %s253
      %p255 = scmp.lt.s32.totalorder %s19, 1
      %s256 = scalar_select %p255, %s19, 1
      %p257 = scmp.lt.s32.totalorder %s20, 0
      %s258 = scalar_select %p257, %s20, 0
      %s259 = smul.addr %s258, 2
      %s260 = smul.addr %s256, 2
      %s261 = sadd.s32 %s259, %s260
      %s262 = smul.addr %s261, 4
      %s263 = scalar_lea.vmem %s0, %s262
      %p264 = scmp.lt.s32.totalorder %s20, 0
      %s265 = scalar_select %p264, %s20, 0
      %s266 = smul.addr %s265, 4
      %s267 = scalar_lea.vmem %s1, %s266
      %p268 = scmp.lt.s32.totalorder %s20, 0
      %s269 = scalar_select %p268, %s20, 0
      %s270 = smul.addr %s269, 4
      %s271 = scalar_lea.vmem %s2, %s270
      %p272 = scmp.lt.s32.totalorder %s20, 0
      %s273 = scalar_select %p272, %s20, 0
      %s274 = smul.addr %s273, 4
      %s275 = scalar_lea.vmem %s3, %s274
      %p276 = scmp.lt.s32.totalorder %s19, 1
      %s277 = scalar_select %p276, %s19, 1
      %p278 = scmp.lt.s32.totalorder %s20, 0
      %s279 = scalar_select %p278, %s20, 0
      %s280 = smul.addr %s279, 2
      %s281 = smul.addr %s277, 2
      %s282 = sadd.s32 %s280, %s281
      %s283 = smul.addr %s282, 4
      %s284 = scalar_lea.vmem %s4, %s283
      %v285 = vld [vmem:[%s263] sm:$0xff]
      %v287 = vcombine.high %v285, %v285
      %vm289 = vcmask 1043456
      %v290 = vsel %vm289, %v285, 0.0
      %v291 = vsel %vm289, %v287, 0.0
      %v292 = vadd.f32 %v290, %v291
      %293 = vadd.xlane.f32.xlu0 %v292
      %v294 = vpop.xlane.xlu0 %293
      %v295 = vmul.f32 %v285, %v285
      %v297 = vcombine.high %v295, %v295
      %v299 = vsel %vm289, %v295, 0.0
      %v300 = vsel %vm289, %v297, 0.0
      %v301 = vadd.f32 %v299, %v300
      %302 = vadd.xlane.f32.xlu0 %v301
      %v303 = vpop.xlane.xlu0 %302
      %v304 = vmul.f32 %v294, 0.00390625
      %v305 = vmul.f32 %v303, 0.00390625
      %v306 = vmul.f32 %v304, %v304
      %v307 = vsub.f32 %v305, %v306
      %v308 = vmax.f32 %v307, 0.0
      %v309 = vadd.f32 %v308, 1e-05
      %v310 = vrsqrt.pop %v309
      %v311 = vld [vmem:[%s267] sm:$0xf]
      %v312 = vld [vmem:[%s271] sm:$0xf]
      %v313 = vld [vmem:[%s275] sm:$0xf]
      %v314 = vmul.f32 %v313, %v310
      %v315 = vsub.f32 1.0, %v313
      %v316 = vadd.f32 %v314, %v315
      %v317 = vmul.f32 %v311, %v316
      %v318 = vmul.f32 %v313, %v304
      %v319 = vmul.f32 %v318, %v317
      %v320 = vsub.f32 %v312, %v319
      %322 = vset.pattern.permute.xlu0 0
      %323 = vperm.xlu0 %322, %v317
      %v324 = vpop.permute.xlu0 %323
      %v326 = vunpack.c.l.s4 839922192
      %v327 = vunpack.c.0.s8 %v326
      %v328 = vlaneseq
      %v329 = vshrl.u32 %v328, 7
      %v330 = vsub.s32 %v327, %v329
      %v331 = vrot.slane %v324, %v330
      %v333 = vmul.f32 %v285, %v331
      %335 = vset.pattern.permute.xlu0 0
      %336 = vperm.xlu0 %335, %v320
      %v337 = vpop.permute.xlu0 %336
      %v339 = vunpack.c.l.s4 839922192
      %v340 = vunpack.c.0.s8 %v339
      %v341 = vlaneseq
      %v342 = vshrl.u32 %v341, 7
      %v343 = vsub.s32 %v340, %v342
      %v344 = vrot.slane %v337, %v343
      %v346 = vadd.f32 %v333, %v344
      %347 = vst [vmem:[%s284] sm:$0xff] %v346
      %p348 = scmp.lt.s32.totalorder %s19, 1
      %s349 = scalar_select %p348, %s19, 1
      %p350 = scmp.lt.s32.totalorder %s20, 0
      %s351 = scalar_select %p350, %s20, 0
      %s352 = smul.addr %s351, 2
      %s353 = smul.addr %s349, 2
      %s354 = sadd.s32 %s352, %s353
      %s355 = smul.addr %s354, 4
      %s356 = scalar_lea.vmem %s4, %s355
      // Predicated region
      $region37: #{ibn_forward.3} parent=35 // pred_check
        %p357 = pneg %p153
      $region38: #{ibn_forward.3} parent=35 // pred_check_branch
        %359 = sbr.rel (%p357) target = $region40
      $region39: #{ibn_forward.3} parent=35 // pred_region
        _
      $region40: #{ibn_forward.3} parent=35 // pred_fallthru
        _
    $region36: #{ibn_forward.3} parent=5 // pred_fallthru
      _
    %p360 = scmp.le.s32.totalorder 2, %s10
    // Predicated region
    $region41: #{ibn_forward.3} parent=5 // pred_check
      %p361 = pneg %p360
    $region42: #{ibn_forward.3} parent=5 // pred_check_branch
      %363 = sbr.rel (%p361) target = $region44
    $region43: #{ibn_forward.3} parent=5 // pred_region
      %s364 = ssub.s32 %s10, 2
      // Predicated region
      $region45: #{ibn_forward.3} parent=43 // pred_check
        %p365 = pneg %p159
      $region46: #{ibn_forward.3} parent=43 // pred_check_branch
        %367 = sbr.rel (%p365) target = $region48
      $region47: #{ibn_forward.3} parent=43 // pred_region
        %p368 = scmp.lt.s32.totalorder %s21, 1
        %s369 = scalar_select %p368, %s21, 1
        %p370 = scmp.lt.s32.totalorder %s22, 0
        %s371 = scalar_select %p370, %s22, 0
        %s372 = smul.addr %s371, 2
        %s373 = smul.addr %s369, 2
        %s374 = sadd.s32 %s372, %s373
        %s375 = smul.addr %s374, 4
        %s376 = scalar_lea.vmem %s4, %s375
      $region48: #{ibn_forward.3} parent=43 // pred_fallthru
        _
    $region44: #{ibn_forward.3} parent=5 // pred_fallthru
      _
  $region6: #{ibn_forward.3} parent=0 // loop_footer
    %s14 = sadd.s32 1, %s10
  $region7: #{ibn_forward.3} parent=0 // loop_footer_branch
    %9 = sbr.rel target = $region3
  $region8: #{ibn_forward.3} parent=0 // loop_exit
    _

// kernel: ibn_forward.2
$region0: #{ibn_forward.2}
  #allocation0 [shape = 'u32[]', space=smem, size = 0x4, offset = 0x4, fixed_abs, tag = 'smem constant byte address 0x4 - core index']
  #allocation1 [shape = 'u32[144,128]{1,0:T(1,128)}', space=vmem, size = 0x12000, scoped, tag = 'internal scratch']
  %s0 = inlined_call_operand.vmem [shape: f32[2,4,256], index: 0, kind: input, shape index: {}]
  %s1 = inlined_call_operand.vmem [shape: f32[1,4,1], index: 1, kind: output, shape index: {0}]
  %s2 = inlined_call_operand.vmem [shape: f32[1,4,1], index: 2, kind: output, shape index: {1}]
  %3 = xla_tuple %s1, %s2
  %s4 = sld [smem:[#allocation0]]
  $region49: #{ibn_forward.2} parent=0
    _
  %s6 = ssub.s32 1, %s4
  %s7 = scalar_select 0, %s6, %s4
  loop: start=0, step=1, limit=4
  $region2: #{ibn_forward.2} parent=0 // loop_pre_header
    _
  $region3: #{ibn_forward.2} parent=0 // loop_header
    %s9 = sphi 0, %s13
    %p10 = scmp.ge.s32.totalorder %s9, 4
    %s16 = sphi 0, %s28
    %s17 = sphi 0, %s24
    %s18 = sphi 0, %s16
    %s19 = sphi 0, %s17
    %s20 = sphi 0, %s18
    %s21 = sphi 0, %s19
    %s33 = sphi 0, %s35
    %s36 = sphi 0, %s33
    %s37 = sphi 0, %s36
    %s53 = sphi 0, %s37
    %s59 = sphi 0, %s61
    %s62 = sphi 0, %s59
    %s63 = sphi 0, %s62
    %s79 = sphi 0, %s63
    %s85 = sphi 0, %s87
    %s88 = sphi 0, %s85
    %s89 = sphi 0, %s88
    %s105 = sphi 0, %s89
  $region4: #{ibn_forward.2} parent=0 // loop_header_branch
    %12 = sbr.rel (%p10) target = $region8
  $region5: #{ibn_forward.2} parent=0 // loop_body
    %s14 = ssub.s32 %s9, 1
    %s15 = ssub.s32 %s9, 2
    %s22 = sadd.s32 1, %s17
    %p23 = scmp.ge.s32.totalorder %s22, 2
    %s24 = scalar_select %p23, 0, %s22
    %s25 = sadd.s32 1, %s16
    %s26 = scalar_select %p23, %s25, %s16
    %p27 = scmp.ge.s32.totalorder %s26, 1
    %s28 = scalar_select %p27, 0, %s26
    %s29 = ssub.s32 %s17, %s24
    %s30 = ssub.s32 %s16, %s28
    %s31 = sor.u32 %s29, %s30
    %p32 = scmp.eq.s32.totalorder %s31, 0
    %s34 = sadd.s32 %s33, 1
    %s35 = scalar_select %p32, %s33, %s34
    %p38 = pneg %p32
    %p39 = scmp.eq.s32.totalorder %s9, 1
    %p40 = por %p38, %p39
    %p41 = scmp.ne.s32.totalorder %s33, %s36
    %p42 = scmp.eq.s32.totalorder %s9, 0
    %p43 = por %p41, %p42
    %p44 = scmp.ne.s32.totalorder %s33, %s36
    %p45 = scmp.eq.s32.totalorder %s14, 1
    %p46 = por %p44, %p45
    %p47 = scmp.ne.s32.totalorder %s36, %s37
    %p48 = scmp.eq.s32.totalorder %s14, 0
    %p49 = por %p47, %p48
    %p50 = scmp.ne.s32.totalorder %s36, %s37
    %p51 = scmp.eq.s32.totalorder %s15, 1
    %p52 = por %p50, %p51
    %p54 = scmp.ne.s32.totalorder %s37, %s53
    %p55 = scmp.eq.s32.totalorder %s15, 0
    %p56 = por %p54, %p55
    %s57 = ssub.s32 %s16, %s28
    %p58 = scmp.eq.s32.totalorder %s57, 0
    %s60 = sadd.s32 %s59, 1
    %s61 = scalar_select %p58, %s59, %s60
    %p64 = pneg %p58
    %p65 = scmp.eq.s32.totalorder %s9, 1
    %p66 = por %p64, %p65
    %p67 = scmp.ne.s32.totalorder %s59, %s62
    %p68 = scmp.eq.s32.totalorder %s9, 0
    %p69 = por %p67, %p68
    %p70 = scmp.ne.s32.totalorder %s59, %s62
    %p71 = scmp.eq.s32.totalorder %s14, 1
    %p72 = por %p70, %p71
    %p73 = scmp.ne.s32.totalorder %s62, %s63
    %p74 = scmp.eq.s32.totalorder %s14, 0
    %p75 = por %p73, %p74
    %p76 = scmp.ne.s32.totalorder %s62, %s63
    %p77 = scmp.eq.s32.totalorder %s15, 1
    %p78 = por %p76, %p77
    %p80 = scmp.ne.s32.totalorder %s63, %s79
    %p81 = scmp.eq.s32.totalorder %s15, 0
    %p82 = por %p80, %p81
    %s83 = ssub.s32 %s16, %s28
    %p84 = scmp.eq.s32.totalorder %s83, 0
    %s86 = sadd.s32 %s85, 1
    %s87 = scalar_select %p84, %s85, %s86
    %p90 = pneg %p84
    %p91 = scmp.eq.s32.totalorder %s9, 1
    %p92 = por %p90, %p91
    %p93 = scmp.ne.s32.totalorder %s85, %s88
    %p94 = scmp.eq.s32.totalorder %s9, 0
    %p95 = por %p93, %p94
    %p96 = scmp.ne.s32.totalorder %s85, %s88
    %p97 = scmp.eq.s32.totalorder %s14, 1
    %p98 = por %p96, %p97
    %p99 = scmp.ne.s32.totalorder %s88, %s89
    %p100 = scmp.eq.s32.totalorder %s14, 0
    %p101 = por %p99, %p100
    %p102 = scmp.ne.s32.totalorder %s88, %s89
    %p103 = scmp.eq.s32.totalorder %s15, 1
    %p104 = por %p102, %p103
    %p106 = scmp.ne.s32.totalorder %s89, %s105
    %p107 = scmp.eq.s32.totalorder %s15, 0
    %p108 = por %p106, %p107
    %p109 = scmp.le.s32.totalorder 1, %s9
    %p110 = scmp.lt.s32.totalorder %s9, 3
    %p111 = pnand %p109, %p110
    %p112 = pneg %p111
    // Predicated region
    $region9: #{ibn_forward.2} parent=5 // pred_check
      _
    $region10: #{ibn_forward.2} parent=5 // pred_check_branch
      %114 = sbr.rel (%p111) target = $region12
    $region11: #{ibn_forward.2} parent=5 // pred_region
      %s115 = ssub.s32 %s9, 1
    $region12: #{ibn_forward.2} parent=5 // pred_fallthru
      _
    %p116 = scmp.lt.s32.totalorder %s9, 2
    // Predicated region
    $region13: #{ibn_forward.2} parent=5 // pred_check
      %p117 = pneg %p116
    $region14: #{ibn_forward.2} parent=5 // pred_check_branch
      %119 = sbr.rel (%p117) target = $region16
    $region15: #{ibn_forward.2} parent=5 // pred_region
      // Predicated region
      $region17: #{ibn_forward.2} parent=15 // pred_check
        %p120 = pneg %p43
      $region18: #{ibn_forward.2} parent=15 // pred_check_branch
        %122 = sbr.rel (%p120) target = $region20
      $region19: #{ibn_forward.2} parent=15 // pred_region
        %p123 = scmp.lt.s32.totalorder %s17, 1
        %s124 = scalar_select %p123, %s17, 1
        %p125 = scmp.lt.s32.totalorder %s16, 0
        %s126 = scalar_select %p125, %s16, 0
        %s127 = smul.addr %s126, 2
        %s128 = smul.addr %s124, 2
        %s129 = sadd.s32 %s127, %s128
        %s130 = smul.addr %s129, 4
        %s131 = scalar_lea.vmem %s0, %s130
      $region20: #{ibn_forward.2} parent=15 // pred_fallthru
        _
    $region16: #{ibn_forward.2} parent=5 // pred_fallthru
      _
    %p132 = scmp.le.s32.totalorder 1, %s9
    %p133 = scmp.lt.s32.totalorder %s9, 3
    %p134 = pnand %p132, %p133
    %p135 = pneg %p134
    // Predicated region
    $region21: #{ibn_forward.2} parent=5 // pred_check
      _
    $region22: #{ibn_forward.2} parent=5 // pred_check_branch
      %137 = sbr.rel (%p134) target = $region24
    $region23: #{ibn_forward.2} parent=5 // pred_region
      %s138 = ssub.s32 %s9, 1
      %p139 = scmp.lt.s32.totalorder %s19, 1
      %s140 = scalar_select %p139, %s19, 1
      %p141 = scmp.lt.s32.totalorder %s18, 0
      %s142 = scalar_select %p141, %s18, 0
      %s143 = smul.addr %s142, 2
      %s144 = smul.addr %s140, 2
      %s145 = sadd.s32 %s143, %s144
      %s146 = smul.addr %s145, 4
      %s147 = scalar_lea.vmem %s0, %s146
      %p148 = pneg %p49
      %p149 = pneg %p46
      %p150 = pneg %p75
      %p151 = pneg %p72
      %p152 = scmp.lt.s32.totalorder %s18, 0
      %s153 = scalar_select %p152, %s18, 0
      %s154 = smul.addr %s153, 4
      %s155 = scalar_lea.vmem %s1, %s154
      %p156 = pneg %p101
      %p157 = pneg %p98
      %p158 = scmp.lt.s32.totalorder %s18, 0
      %s159 = scalar_select %p158, %s18, 0
      %s160 = smul.addr %s159, 4
      %s161 = scalar_lea.vmem %s2, %s160
      %p162 = scmp.lt.s32.totalorder %s19, 1
      %s163 = scalar_select %p162, %s19, 1
      %p164 = scmp.lt.s32.totalorder %s18, 0
      %s165 = scalar_select %p164, %s18, 0
      %s166 = smul.addr %s165, 2
      %s167 = smul.addr %s163, 2
      %s168 = sadd.s32 %s166, %s167
      %s169 = smul.addr %s168, 4
      %s170 = scalar_lea.vmem %s0, %s169
      %p171 = scmp.lt.s32.totalorder %s18, 0
      %s172 = scalar_select %p171, %s18, 0
      %s173 = smul.addr %s172, 4
      %s174 = scalar_lea.vmem %s1, %s173
      %p175 = scmp.lt.s32.totalorder %s18, 0
      %s176 = scalar_select %p175, %s18, 0
      %s177 = smul.addr %s176, 4
      %s178 = scalar_lea.vmem %s2, %s177
      %p179 = scmp.eq.s32.totalorder %s19, 0
      // Predicated region
      $region25: #{ibn_forward.2} parent=23 // pred_check
        %p180 = pneg %p179
      $region26: #{ibn_forward.2} parent=23 // pred_check_branch
        %182 = sbr.rel (%p180) target = $region28
      $region27: #{ibn_forward.2} parent=23 // pred_region
        %vm183 = vcmask 3072
        %184 = vst.msk [vmem:[%s174] sm:$0xf] %vm183, 0.0
        %185 = vst.msk [vmem:[%s178] sm:$0xf] %vm183, 0.0
      $region28: #{ibn_forward.2} parent=23 // pred_fallthru
        _
      %v186 = vld [vmem:[%s170] sm:$0xff]
      %v187 = vld [vmem:[%s174] sm:$0xf]
      %v189 = vcombine.high %v186, %v186
      %vm191 = vcmask 1043456
      %v192 = vsel %vm191, %v186, 0.0
      %v193 = vsel %vm191, %v189, 0.0
      %v194 = vadd.f32 %v192, %v193
      %195 = vadd.xlane.f32.xlu0 %v194
      %v196 = vpop.xlane.xlu0 %195
      %v197 = vadd.f32 %v187, %v196
      %vm198 = vcmask 3072
      %199 = vst.msk [vmem:[%s174] sm:$0xf] %vm198, %v197
      %v200 = vld [vmem:[%s178] sm:$0xf]
      %v201 = vmul.f32 %v186, %v186
      %v203 = vcombine.high %v201, %v201
      %v205 = vsel %vm191, %v201, 0.0
      %v206 = vsel %vm191, %v203, 0.0
      %v207 = vadd.f32 %v205, %v206
      %208 = vadd.xlane.f32.xlu0 %v207
      %v209 = vpop.xlane.xlu0 %208
      %v210 = vadd.f32 %v200, %v209
      %211 = vst.msk [vmem:[%s178] sm:$0xf] %vm198, %v210
      %p212 = scmp.lt.s32.totalorder %s18, 0
      %s213 = scalar_select %p212, %s18, 0
      %s214 = smul.addr %s213, 4
      %s215 = scalar_lea.vmem %s1, %s214
      %p216 = scmp.lt.s32.totalorder %s18, 0
      %s217 = scalar_select %p216, %s18, 0
      %s218 = smul.addr %s217, 4
      %s219 = scalar_lea.vmem %s2, %s218
      // Predicated region
      $region29: #{ibn_forward.2} parent=23 // pred_check
        %p220 = pneg %p72
      $region30: #{ibn_forward.2} parent=23 // pred_check_branch
        %222 = sbr.rel (%p220) target = $region32
      $region31: #{ibn_forward.2} parent=23 // pred_region
        _
      $region32: #{ibn_forward.2} parent=23 // pred_fallthru
        _
      // Predicated region
      $region33: #{ibn_forward.2} parent=23 // pred_check
        %p223 = pneg %p98
      $region34: #{ibn_forward.2} parent=23 // pred_check_branch
        %225 = sbr.rel (%p223) target = $region36
      $region35: #{ibn_forward.2} parent=23 // pred_region
        _
      $region36: #{ibn_forward.2} parent=23 // pred_fallthru
        _
      // Predicated region
      $region37: #{ibn_forward.2} parent=23 // pred_check
        %p226 = pneg %p72
      $region38: #{ibn_forward.2} parent=23 // pred_check_branch
        %228 = sbr.rel (%p226) target = $region40
      $region39: #{ibn_forward.2} parent=23 // pred_region
        %p229 = scmp.lt.s32.totalorder %s18, 0
        %s230 = scalar_select %p229, %s18, 0
        %s231 = smul.addr %s230, 4
        %s232 = scalar_lea.vmem %s1, %s231
      $region40: #{ibn_forward.2} parent=23 // pred_fallthru
        _
      // Predicated region
      $region41: #{ibn_forward.2} parent=23 // pred_check
        %p233 = pneg %p98
      $region42: #{ibn_forward.2} parent=23 // pred_check_branch
        %235 = sbr.rel (%p233) target = $region44
      $region43: #{ibn_forward.2} parent=23 // pred_region
        %p236 = scmp.lt.s32.totalorder %s18, 0
        %s237 = scalar_select %p236, %s18, 0
        %s238 = smul.addr %s237, 4
        %s239 = scalar_lea.vmem %s2, %s238
      $region44: #{ibn_forward.2} parent=23 // pred_fallthru
        _
    $region24: #{ibn_forward.2} parent=5 // pred_fallthru
      _
    %p240 = scmp.le.s32.totalorder 2, %s9
    // Predicated region
    $region45: #{ibn_forward.2} parent=5 // pred_check
      %p241 = pneg %p240
    $region46: #{ibn_forward.2} parent=5 // pred_check_branch
      %243 = sbr.rel (%p241) target = $region48
    $region47: #{ibn_forward.2} parent=5 // pred_region
      %s244 = ssub.s32 %s9, 2
    $region48: #{ibn_forward.2} parent=5 // pred_fallthru
      _
  $region6: #{ibn_forward.2} parent=0 // loop_footer
    %s13 = sadd.s32 1, %s9
  $region7: #{ibn_forward.2} parent=0 // loop_footer_branch
    %8 = sbr.rel target = $region3
  $region8: #{ibn_forward.2} parent=0 // loop_exit
    _

</llo_original>
